<compile_context>
chip_gen: v6e
topology: v6e:2x2x1
jax: 0.10.0
libtpu: 0.0.40
codegen_flags: <defaults>
</compile_context>

<pallas_src>
import functools

import jax
import jax.numpy as jnp
from jax.experimental import pallas as pl
from jax.experimental.pallas import tpu as pltpu

# ~2 MiB per block; double-buffered input + output -> ~8 MiB scoped VMEM.
_BLOCK_BUDGET_BYTES = 2 * 1024 * 1024


def _choose_sample_block(sample_shape, itemsize, budget_bytes):
    """Per-sample block shape: trailing dims kept full, leading dims tiled.

    The last two block dims are either the full array dims or (8,128)-aligned,
    so the BlockSpec always satisfies the TPU tiling constraint; every block
    maps to a contiguous slab of the sample in HBM.
    """
    k = len(sample_shape)
    budget = max(1, budget_bytes // itemsize)  # element budget per block
    block = [1] * k

    # Lane (minor-most) dim.
    d_lane = sample_shape[-1]
    if d_lane <= budget:
        block[-1] = d_lane
    else:
        block[-1] = max(128, (budget // 128) * 128)
    suffix = block[-1]

    # Sublane (second-minor) dim.
    if k >= 2:
        d_sub = sample_shape[-2]
        if suffix * d_sub <= budget:
            block[-2] = d_sub
        else:
            block[-2] = max(min(d_sub, 8), ((budget // suffix) // 8) * 8)
        suffix *= block[-2]

    # Leading dims: take full dims while they fit, then one partial tile;
    # everything before that stays at 1.
    for i in range(k - 3, -1, -1):
        d = sample_shape[i]
        if suffix * d <= budget:
            block[i] = d
            suffix *= d
        else:
            block[i] = max(1, budget // suffix)
            break
    return tuple(block)


def _complete_dropout_kernel(scale_ref, x_ref, o_ref):
    """o = x * scale[b] for one (1, *sample_block) tile of sample b.

    scale_ref: SMEM (B,) float32, scalar-prefetched.
    x_ref / o_ref: VMEM tiles of shape (1, *sample_block).
    """
    b = pl.program_id(0)
    s = scale_ref[b]                                   # f32 scalar
    o_ref[...] = (x_ref[...] * s).astype(o_ref.dtype)


def _pallas_scale_per_sample(xb, scale, *, block_budget_bytes=_BLOCK_BUDGET_BYTES):
    """xb: (B, *sample); scale: (B,) f32.  Returns xb * scale[b] per sample."""
    B = xb.shape[0]
    sample_shape = xb.shape[1:]
    blk = _choose_sample_block(
        sample_shape, jnp.dtype(xb.dtype).itemsize, block_budget_bytes)
    block_shape = (1,) + blk
    grid = (B,) + tuple(pl.cdiv(d, t) for d, t in zip(sample_shape, blk))

    def idx_map(*args):
        # args = (b, g1, ..., gk, scale_ref); scalar-prefetch ref is last.
        return args[:-1]

    return pl.pallas_call(
        _complete_dropout_kernel,
        out_shape=jax.ShapeDtypeStruct(xb.shape, xb.dtype),
        grid_spec=pltpu.PrefetchScalarGridSpec(
            num_scalar_prefetch=1,
            grid=grid,
            in_specs=[pl.BlockSpec(block_shape, idx_map)],
            out_specs=pl.BlockSpec(block_shape, idx_map),
        ),
        compiler_params=pltpu.CompilerParams(
            dimension_semantics=("parallel",) * len(grid),
        ),
    )(scale, xb)


@functools.partial(
    jax.jit, static_argnames=("n_dim", "p", "training", "block_budget_bytes"))
def complete_dropout_nd(x, key, *, n_dim, p=0.5, training=True,
                        block_budget_bytes=_BLOCK_BUDGET_BYTES):
    """Forward pass equivalent of CompleteDropoutNd(n_dim, p).forward(x)."""
    if p < 0 or p > 1:
        raise ValueError(f"dropout probability has to be between 0 and 1, got {p}")

    # Identity paths: no kernel launch, no HBM pass.
    if (not training) or p == 0.0:
        return x

    is_batched = x.ndim == n_dim + 2

    # Degenerate all-drop path: never read x.
    if p >= 1.0:
        return jnp.zeros_like(x)

    xb = x if is_batched else x[None]
    B = xb.shape[0]

    # TODO(synk): `inplace=True` has no JAX equivalent (functional arrays);
    # the functional result is returned instead.
    keep = jax.random.bernoulli(key, 1.0 - p, (B,))
    scale = jnp.where(keep, jnp.float32(1.0 / (1.0 - p)), jnp.float32(0.0))

    out = _pallas_scale_per_sample(xb, scale,
                                   block_budget_bytes=block_budget_bytes)
    return out if is_batched else out[0]


if __name__ == "__main__":
    key = jax.random.PRNGKey(0)
    k_x, k_drop, k_x2, k_x3 = jax.random.split(key, 4)
    p = 0.5

    # Main case: (B, C, H, W), n_dim=2.
    B, C, H, W = 2, 4, 16, 16
    x = jax.random.normal(k_x, (B, C, H, W), dtype=jnp.float32)
    out = jax.block_until_ready(
        complete_dropout_nd(x, k_drop, n_dim=2, p=p, training=True))

    keep_ref = jax.random.bernoulli(k_drop, 1.0 - p, (B,))
    scale_ref = jnp.where(keep_ref, 1.0 / (1.0 - p), 0.0).astype(jnp.float32)
    ref = x * scale_ref[:, None, None, None]
    assert out.shape == x.shape and out.dtype == x.dtype
    assert jnp.allclose(out, ref, atol=1e-6), "mismatch vs reference"

    # Forced leading-dim tiling (tiny block budget).
    out_tiled = jax.block_until_ready(
        complete_dropout_nd(x, k_drop, n_dim=2, p=p, training=True,
                            block_budget_bytes=1024))
    assert jnp.allclose(out_tiled, ref, atol=1e-6), "mismatch (tiled path)"

    # Awkward, non-aligned spatial dims (full-dim trailing block, masked lanes).
    x2 = jax.random.normal(k_x2, (2, 3, 7, 9), dtype=jnp.float32)
    out2 = jax.block_until_ready(
        complete_dropout_nd(x2, k_drop, n_dim=2, p=p, training=True))
    keep2 = jax.random.bernoulli(k_drop, 1.0 - p, (2,))
    ref2 = x2 * jnp.where(keep2, 1.0 / (1.0 - p), 0.0)[:, None, None, None]
    assert jnp.allclose(out2, ref2, atol=1e-6), "mismatch (odd dims)"

    # Partial sublane tile with an uneven edge block.
    x3 = jax.random.normal(k_x3, (2, 4, 20, 128), dtype=jnp.float32)
    out3 = jax.block_until_ready(
        complete_dropout_nd(x3, k_drop, n_dim=2, p=p, training=True,
                            block_budget_bytes=8192))
    keep3 = jax.random.bernoulli(k_drop, 1.0 - p, (2,))
    ref3 = x3 * jnp.where(keep3, 1.0 / (1.0 - p), 0.0)[:, None, None, None]
    assert jnp.allclose(out3, ref3, atol=1e-6), "mismatch (sublane tiling)"

    # Unbatched input (C, H, W) -> treated as batch of one.
    xu = x[0]
    outu = jax.block_until_ready(
        complete_dropout_nd(xu, k_drop, n_dim=2, p=p, training=True))
    keepu = jax.random.bernoulli(k_drop, 1.0 - p, (1,))
    refu = xu * jnp.where(keepu, 1.0 / (1.0 - p), 0.0)[0]
    assert outu.shape == xu.shape
    assert jnp.allclose(outu, refu, atol=1e-6), "mismatch (unbatched)"

    # bf16 path: multiply in f32, cast back.
    xb16 = x.astype(jnp.bfloat16)
    outb16 = jax.block_until_ready(
        complete_dropout_nd(xb16, k_drop, n_dim=2, p=p, training=True))
    refb16 = (xb16.astype(jnp.float32)
              * scale_ref[:, None, None, None]).astype(jnp.bfloat16)
    assert outb16.dtype == jnp.bfloat16
    assert jnp.allclose(outb16.astype(jnp.float32), refb16.astype(jnp.float32),
                        atol=1e-2, rtol=1e-2), "mismatch (bf16)"

    # Eval mode: identity, short-circuited (no kernel launch).
    out_eval = jax.block_until_ready(
        complete_dropout_nd(x, k_drop, n_dim=2, p=p, training=False))
    assert jnp.allclose(out_eval, x), "eval mode should be identity"

    # p >= 1: all zeros, without reading x through the kernel.
    out_all = jax.block_until_ready(
        complete_dropout_nd(x, k_drop, n_dim=2, p=1.0, training=True))
    assert jnp.allclose(out_all, jnp.zeros_like(x)), "p=1 should zero everything"

    print("KERNEL_OK")
</pallas_src>

<mosaic_0001>
module attributes {stable_mosaic.version = 11 : i64} {
  func.func @_complete_dropout_kernel(%arg0: i32, %arg1: i32, %arg2: i32, %arg3: i32, %arg4: memref<2xf32, #tpu.memory_space<smem>>, %arg5: memref<1x4x16x16xf32, #tpu.memory_space<vmem>>, %arg6: memref<1x4x16x16xf32, #tpu.memory_space<vmem>>) attributes {dimension_semantics = [#tpu.dimension_semantics<parallel>, #tpu.dimension_semantics<parallel>, #tpu.dimension_semantics<parallel>, #tpu.dimension_semantics<parallel>], iteration_bounds = array<i64: 2, 1, 1, 1>, scalar_prefetch = 1 : i64, scratch_operands = 0 : i64, tpu.core_type = #tpu.core_type<tc>, window_params = [{transform_indices = @transform_0, window_bounds = array<i64: 1, 4, 16, 16>}, {transform_indices = @transform_1, window_bounds = array<i64: 1, 4, 16, 16>}]} {
    %0 = arith.index_cast %arg0 : i32 to index
    %1 = memref.load %arg4[%0] : memref<2xf32, #tpu.memory_space<smem>>
    %c0 = arith.constant 0 : index
    %c0_0 = arith.constant 0 : index
    %c0_1 = arith.constant 0 : index
    %c0_2 = arith.constant 0 : index
    %2 = vector.load %arg5[%c0, %c0_0, %c0_1, %c0_2] : memref<1x4x16x16xf32, #tpu.memory_space<vmem>>, vector<1x4x16x16xf32>
    %3 = vector.broadcast %1 : f32 to vector<1x4x16x16xf32>
    %4 = arith.mulf %2, %3 : vector<1x4x16x16xf32>
    %c0_3 = arith.constant 0 : index
    %c0_4 = arith.constant 0 : index
    %c0_5 = arith.constant 0 : index
    %c0_6 = arith.constant 0 : index
    %5 = vector.load %arg6[%c0_3, %c0_4, %c0_5, %c0_6] : memref<1x4x16x16xf32, #tpu.memory_space<vmem>>, vector<1x4x16x16xf32>
    tpu.vector_store %arg6[%c0_3, %c0_4, %c0_5, %c0_6], %4 {strides = array<i32>} : memref<1x4x16x16xf32, #tpu.memory_space<vmem>>, vector<1x4x16x16xf32>,
    return
  }
  func.func @transform_0(%arg0: i32, %arg1: i32, %arg2: i32, %arg3: i32, %arg4: memref<2xf32, #tpu.memory_space<smem>>) -> (i32, i32, i32, i32) {
    %c0_i32 = arith.constant 0 : i32
    return %arg0, %arg1, %arg2, %arg3 : i32, i32, i32, i32
  }
  func.func @transform_1(%arg0: i32, %arg1: i32, %arg2: i32, %arg3: i32, %arg4: memref<2xf32, #tpu.memory_space<smem>>) -> (i32, i32, i32, i32) {
    %c0_i32 = arith.constant 0 : i32
    return %arg0, %arg1, %arg2, %arg3 : i32, i32, i32, i32
  }
}

</mosaic_0001>

<llo_original>
// kernel: complete_dropout_nd.1
$region0: #{complete_dropout_nd.1}
  #allocation0 [shape = 'u32[]', space=smem, size = 0x4, offset = 0x4, fixed_abs, tag = 'smem constant byte address 0x4 - core index']
  #allocation1 [shape = 'u32[144,128]{1,0:T(1,128)}', space=vmem, size = 0x12000, scoped, tag = 'internal scratch']
  #allocation2 [shape = 's32[1]{0}', space=sflag, size = 0x4, scoped, tag = 'scoped memory for complete_dropout_nd.1']
  #allocation3 [shape = 'u8[512]{0}', space=smem, size = 0x200, scoped, tag = 'prefetched SMEM operand 0']
  %s0 = inlined_call_operand.vmem [shape: f32[2], index: 0, kind: input, shape index: {}]
  %s1 = inlined_call_operand.hbm [shape: f32[2,4,16,16], index: 1, kind: input, shape index: {}]
  %s2 = inlined_call_operand.hbm [shape: f32[2,4,16,16], index: 2, kind: output, shape index: {}]
  %s3 = sld [smem:[#allocation0]]
  $region41: #{complete_dropout_nd.1} parent=0
    _
  %s5 = ssub.s32 1, %s3
  %s6 = scalar_select 0, %s5, %s3
  %s7 = sshll.u32 %s0, 4
  %s8 = int_to_ptr.vmem [resolvable:$true] %s7
  %10 = dma.vmem_to_smem %s8, 16, [#allocation3], [#allocation2]
  %11 = dma.done [#allocation2], 16
  %12 = sfence
  $region1: #{complete_dropout_nd.1} parent=0
    #allocation4 [shape = 'u8[65536]{0}', space=vmem, size = 0x10000, scoped, tag = 'input window, operand 1']
    #allocation5 [shape = 's32[2]{0}', space=sflag, size = 0x8, scoped, tag = 'scoped memory for complete_dropout_nd.1']
    #allocation6 [shape = 's32[2]{0}', space=sflag, size = 0x8, scoped, tag = 'scoped memory for complete_dropout_nd.1']
    #allocation7 [shape = 'u8[65536]{0}', space=vmem, size = 0x10000, scoped, tag = 'output window, operand 0']
    %13 = vsyncpa [#allocation5], 0
    %s14 = scalar_lea.sflag [#allocation5], 1
    %15 = vsyncpa %s14, 0
    %16 = vsyncpa [#allocation6], 0
    %s17 = scalar_lea.sflag [#allocation6], 1
    %18 = vsyncpa %s17, 0
    loop: start=0, step=1, limit=4
    $region2: #{complete_dropout_nd.1} parent=1 // loop_pre_header
      _
    $region3: #{complete_dropout_nd.1} parent=1 // loop_header
      %s20 = sphi 0, %s24
      %p21 = scmp.ge.s32.totalorder %s20, 4
      %s27 = sphi 0, %s53
      %s28 = sphi 0, %s49
      %s29 = sphi 0, %s45
      %s30 = sphi 0, %s41
      %s31 = sphi 0, %s27
      %s32 = sphi 0, %s28
      %s33 = sphi 0, %s29
      %s34 = sphi 0, %s30
      %s35 = sphi 0, %s31
      %s36 = sphi 0, %s32
      %s37 = sphi 0, %s33
      %s38 = sphi 0, %s34
      %s62 = sphi 0, %s64
      %s65 = sphi 0, %s62
      %s66 = sphi 0, %s65
      %s82 = sphi 0, %s66
      %s94 = sphi 0, %s96
      %s97 = sphi 0, %s94
      %s98 = sphi 0, %s97
      %s114 = sphi 0, %s98
    $region4: #{complete_dropout_nd.1} parent=1 // loop_header_branch
      %23 = sbr.rel (%p21) target = $region8
    $region5: #{complete_dropout_nd.1} parent=1 // loop_body
      %s25 = ssub.s32 %s20, 1
      %s26 = ssub.s32 %s20, 2
      %s39 = sadd.s32 1, %s30
      %p40 = scmp.ge.s32.totalorder %s39, 1
      %s41 = scalar_select %p40, 0, %s39
      %s42 = sadd.s32 1, %s29
      %s43 = scalar_select %p40, %s42, %s29
      %p44 = scmp.ge.s32.totalorder %s43, 1
      %s45 = scalar_select %p44, 0, %s43
      %s46 = sadd.s32 1, %s28
      %s47 = scalar_select %p44, %s46, %s28
      %p48 = scmp.ge.s32.totalorder %s47, 1
      %s49 = scalar_select %p48, 0, %s47
      %s50 = sadd.s32 1, %s27
      %s51 = scalar_select %p48, %s50, %s27
      %p52 = scmp.ge.s32.totalorder %s51, 2
      %s53 = scalar_select %p52, 0, %s51
      %s54 = ssub.s32 %s27, %s53
      %s55 = ssub.s32 %s28, %s49
      %s56 = sor.u32 %s54, %s55
      %s57 = ssub.s32 %s29, %s45
      %s58 = sor.u32 %s56, %s57
      %s59 = ssub.s32 %s30, %s41
      %s60 = sor.u32 %s58, %s59
      %p61 = scmp.eq.s32.totalorder %s60, 0
      %s63 = sadd.s32 %s62, 1
      %s64 = scalar_select %p61, %s62, %s63
      %p67 = pneg %p61
      %p68 = scmp.eq.s32.totalorder %s20, 1
      %p69 = por %p67, %p68
      %p70 = scmp.ne.s32.totalorder %s62, %s65
      %p71 = scmp.eq.s32.totalorder %s20, 0
      %p72 = por %p70, %p71
      %p73 = scmp.ne.s32.totalorder %s62, %s65
      %p74 = scmp.eq.s32.totalorder %s25, 1
      %p75 = por %p73, %p74
      %p76 = scmp.ne.s32.totalorder %s65, %s66
      %p77 = scmp.eq.s32.totalorder %s25, 0
      %p78 = por %p76, %p77
      %p79 = scmp.ne.s32.totalorder %s65, %s66
      %p80 = scmp.eq.s32.totalorder %s26, 1
      %p81 = por %p79, %p80
      %p83 = scmp.ne.s32.totalorder %s66, %s82
      %p84 = scmp.eq.s32.totalorder %s26, 0
      %p85 = por %p83, %p84
      %s86 = ssub.s32 %s27, %s53
      %s87 = ssub.s32 %s28, %s49
      %s88 = sor.u32 %s86, %s87
      %s89 = ssub.s32 %s29, %s45
      %s90 = sor.u32 %s88, %s89
      %s91 = ssub.s32 %s30, %s41
      %s92 = sor.u32 %s90, %s91
      %p93 = scmp.eq.s32.totalorder %s92, 0
      %s95 = sadd.s32 %s94, 1
      %s96 = scalar_select %p93, %s94, %s95
      %p99 = pneg %p93
      %p100 = scmp.eq.s32.totalorder %s20, 1
      %p101 = por %p99, %p100
      %p102 = scmp.ne.s32.totalorder %s94, %s97
      %p103 = scmp.eq.s32.totalorder %s20, 0
      %p104 = por %p102, %p103
      %p105 = scmp.ne.s32.totalorder %s94, %s97
      %p106 = scmp.eq.s32.totalorder %s25, 1
      %p107 = por %p105, %p106
      %p108 = scmp.ne.s32.totalorder %s97, %s98
      %p109 = scmp.eq.s32.totalorder %s25, 0
      %p110 = por %p108, %p109
      %p111 = scmp.ne.s32.totalorder %s97, %s98
      %p112 = scmp.eq.s32.totalorder %s26, 1
      %p113 = por %p111, %p112
      %p115 = scmp.ne.s32.totalorder %s98, %s114
      %p116 = scmp.eq.s32.totalorder %s26, 0
      %p117 = por %p115, %p116
      %p118 = scmp.le.s32.totalorder 1, %s20
      %p119 = scmp.lt.s32.totalorder %s20, 3
      %p120 = pnand %p118, %p119
      %p121 = pneg %p120
      // Predicated region
      $region9: #{complete_dropout_nd.1} parent=5 // pred_check
        _
      $region10: #{complete_dropout_nd.1} parent=5 // pred_check_branch
        %123 = sbr.rel (%p120) target = $region12
      $region11: #{complete_dropout_nd.1} parent=5 // pred_region
        %s124 = ssub.s32 %s20, 1
      $region12: #{complete_dropout_nd.1} parent=5 // pred_fallthru
        _
      %p125 = scmp.lt.s32.totalorder %s20, 2
      // Predicated region
      $region13: #{complete_dropout_nd.1} parent=5 // pred_check
        %p126 = pneg %p125
      $region14: #{complete_dropout_nd.1} parent=5 // pred_check_branch
        %128 = sbr.rel (%p126) target = $region16
      $region15: #{complete_dropout_nd.1} parent=5 // pred_region
        // Predicated region
        $region17: #{complete_dropout_nd.1} parent=15 // pred_check
          %p129 = pneg %p72
        $region18: #{complete_dropout_nd.1} parent=15 // pred_check_branch
          %131 = sbr.rel (%p129) target = $region20
        $region19: #{complete_dropout_nd.1} parent=15 // pred_region
          %s132 = sand.u32 %s62, 1
          %s133 = scalar_lea.sflag [#allocation5], %s132
          %s134 = sand.u32 %s62, 1
          %s135 = smul.addr %s134, 64
          %s136 = scalar_lea.vmem [#allocation4], %s135
          %s137 = smul.u32 4, %s28
          %s138 = smul.u32 2, %s29
          %s140 = ssub.s32 1024, 1024
          %141 = vsyncadd %s133, %s140
          %s142 = sadd.s32 %s30, %s138
          %s143 = smul.addr %s137, 2
          %s144 = sadd.s32 %s142, %s143
          %s145 = smul.addr %s27, 8
          %s146 = sadd.s32 %s144, %s145
          %s147 = smul.addr %s146, 128
          %s148 = scalar_lea.hbm %s1, %s147
          %s149 = sshll.u32 %s136, 4
          %s150 = int_to_ptr.vmem [resolvable:$true] %s149
          %155 = dma.hbm_to_vmem [thread:$0]  %s148, 1024, %s150, %s133, 128, 128, 8
        $region20: #{complete_dropout_nd.1} parent=15 // pred_fallthru
          _
      $region16: #{complete_dropout_nd.1} parent=5 // pred_fallthru
        _
      %p156 = scmp.le.s32.totalorder 1, %s20
      %p157 = scmp.lt.s32.totalorder %s20, 3
      %p158 = pnand %p156, %p157
      %p159 = pneg %p158
      // Predicated region
      $region21: #{complete_dropout_nd.1} parent=5 // pred_check
        _
      $region22: #{complete_dropout_nd.1} parent=5 // pred_check_branch
        %161 = sbr.rel (%p158) target = $region24
      $region23: #{complete_dropout_nd.1} parent=5 // pred_region
        %s162 = ssub.s32 %s20, 1
        %s163 = sand.u32 %s65, 1
        %s164 = scalar_lea.sflag [#allocation5], %s163
        %s165 = sand.u32 %s65, 1
        %s166 = smul.addr %s165, 64
        %s167 = scalar_lea.vmem [#allocation4], %s166
        // Predicated region
        $region25: #{complete_dropout_nd.1} parent=23 // pred_check
          %p168 = pneg %p78
        $region26: #{complete_dropout_nd.1} parent=23 // pred_check_branch
          %170 = sbr.rel (%p168) target = $region28
        $region27: #{complete_dropout_nd.1} parent=23 // pred_region
          %171 = dma.done %s164, 1024
        $region28: #{complete_dropout_nd.1} parent=23 // pred_fallthru
          _
        %s172 = sand.u32 %s65, 1
        %s173 = scalar_lea.sflag [#allocation5], %s172
        %s174 = sand.u32 %s65, 1
        %s175 = smul.addr %s174, 64
        %s176 = scalar_lea.vmem [#allocation4], %s175
        %p177 = pneg %p78
        %p178 = pneg %p75
        %p179 = pneg %p110
        %p180 = pneg %p107
        %s181 = sand.u32 %s97, 1
        %s182 = scalar_lea.sflag [#allocation6], %s181
        %s183 = sand.u32 %s97, 1
        %s184 = smul.addr %s183, 64
        %s185 = scalar_lea.vmem [#allocation7], %s184
        %s186 = smul.u32 4, %s32
        %s187 = smul.u32 2, %s33
        %s188 = smul.u32 4, %s32
        %s189 = smul.u32 2, %s33
        %s190 = sld [smem:[#allocation3 + %s31]]
        %v191 = vld [vmem:[%s167] sm:$0xff]
        %v192 = vld [vmem:[%s167 + $0x8] sm:$0xff]
        %v193 = vld [vmem:[%s167 + $0x10] sm:$0xff]
        %v194 = vld [vmem:[%s167 + $0x18] sm:$0xff]
        %v195 = vld [vmem:[%s167 + $0x20] sm:$0xff]
        %v196 = vld [vmem:[%s167 + $0x28] sm:$0xff]
        %v197 = vld [vmem:[%s167 + $0x30] sm:$0xff]
        %v198 = vld [vmem:[%s167 + $0x38] sm:$0xff]
        %v199 = vstv %s190
        %v200 = vmul.f32 %v191, %v199
        %v201 = vmul.f32 %v192, %v199
        %v202 = vmul.f32 %v193, %v199
        %v203 = vmul.f32 %v194, %v199
        %v204 = vmul.f32 %v195, %v199
        %v205 = vmul.f32 %v196, %v199
        %v206 = vmul.f32 %v197, %v199
        %v207 = vmul.f32 %v198, %v199
        %vm208 = vcmask 130048
        %209 = vst.msk [vmem:[%s185] sm:$0xff] %vm208, %v200
        %210 = vst.msk [vmem:[%s185 + $0x8] sm:$0xff] %vm208, %v201
        %211 = vst.msk [vmem:[%s185 + $0x10] sm:$0xff] %vm208, %v202
        %212 = vst.msk [vmem:[%s185 + $0x18] sm:$0xff] %vm208, %v203
        %213 = vst.msk [vmem:[%s185 + $0x20] sm:$0xff] %vm208, %v204
        %214 = vst.msk [vmem:[%s185 + $0x28] sm:$0xff] %vm208, %v205
        %215 = vst.msk [vmem:[%s185 + $0x30] sm:$0xff] %vm208, %v206
        %216 = vst.msk [vmem:[%s185 + $0x38] sm:$0xff] %vm208, %v207
        %s217 = sand.u32 %s97, 1
        %s218 = scalar_lea.sflag [#allocation6], %s217
        %s219 = sand.u32 %s97, 1
        %s220 = smul.addr %s219, 64
        %s221 = scalar_lea.vmem [#allocation7], %s220
        // Predicated region
        $region29: #{complete_dropout_nd.1} parent=23 // pred_check
          %p222 = pneg %p107
        $region30: #{complete_dropout_nd.1} parent=23 // pred_check_branch
          %224 = sbr.rel (%p222) target = $region32
        $region31: #{complete_dropout_nd.1} parent=23 // pred_region
          %s225 = smul.u32 4, %s32
          %s226 = smul.u32 2, %s33
          %s228 = ssub.s32 1024, 1024
          %229 = vsyncadd %s218, %s228
          %s230 = sadd.s32 %s34, %s226
          %s231 = smul.addr %s225, 2
          %s232 = sadd.s32 %s230, %s231
          %s233 = smul.addr %s31, 8
          %s234 = sadd.s32 %s232, %s233
          %s235 = smul.addr %s234, 128
          %s236 = scalar_lea.hbm %s2, %s235
          %s237 = sshll.u32 %s221, 4
          %s238 = int_to_ptr.vmem [resolvable:$true] %s237
          %243 = dma.vmem_to_hbm [thread:$0]  %s238, 1024, %s236, %s218, 128, 128, 8
        $region32: #{complete_dropout_nd.1} parent=23 // pred_fallthru
          _
      $region24: #{complete_dropout_nd.1} parent=5 // pred_fallthru
        _
      %p244 = scmp.le.s32.totalorder 2, %s20
      // Predicated region
      $region33: #{complete_dropout_nd.1} parent=5 // pred_check
        %p245 = pneg %p244
      $region34: #{complete_dropout_nd.1} parent=5 // pred_check_branch
        %247 = sbr.rel (%p245) target = $region36
      $region35: #{complete_dropout_nd.1} parent=5 // pred_region
        %s248 = ssub.s32 %s20, 2
        // Predicated region
        $region37: #{complete_dropout_nd.1} parent=35 // pred_check
          %p249 = pneg %p113
        $region38: #{complete_dropout_nd.1} parent=35 // pred_check_branch
          %251 = sbr.rel (%p249) target = $region40
        $region39: #{complete_dropout_nd.1} parent=35 // pred_region
          %s252 = sand.u32 %s98, 1
          %s253 = scalar_lea.sflag [#allocation6], %s252
          %s254 = sand.u32 %s98, 1
          %s255 = smul.addr %s254, 64
          %s256 = scalar_lea.vmem [#allocation7], %s255
          %257 = dma.done %s253, 1024
        $region40: #{complete_dropout_nd.1} parent=35 // pred_fallthru
          _
      $region36: #{complete_dropout_nd.1} parent=5 // pred_fallthru
        _
    $region6: #{complete_dropout_nd.1} parent=1 // loop_footer
      %s24 = sadd.s32 1, %s20
    $region7: #{complete_dropout_nd.1} parent=1 // loop_footer_branch
      %19 = sbr.rel target = $region3
    $region8: #{complete_dropout_nd.1} parent=1 // loop_exit
      _
    %258 = vsyncpa [#allocation5], 1
    %s259 = scalar_lea.sflag [#allocation5], 1
    %260 = vsyncpa %s259, 1
    %261 = vsyncpa [#allocation6], 1
    %s262 = scalar_lea.sflag [#allocation6], 1
    %263 = vsyncpa %s262, 1

</llo_original>
